<compile_context>
chip_gen: v7x
topology: tpu7x:2x2x1
jax: 0.10.0
libtpu: 0.0.40
codegen_flags: <defaults>
</compile_context>

<pallas_src>
import functools
import math

import jax
import jax.numpy as jnp
from jax.experimental import pallas as pl
from jax.experimental.pallas import tpu as pltpu


def _round_up(x, m):
    return ((x + m - 1) // m) * m


# ---------------------------------------------------------------------------
# Kernel 1: support = x @ W  (used only when Fin > Fout).
# ---------------------------------------------------------------------------
def support_kernel(x_ref, w_ref, o_ref):
    # x_ref: (1, ts, Fin)   w_ref: (Fin, Fout_p)   o_ref: (1, ts, Fout_p)
    o_ref[0] = jnp.dot(
        x_ref[0], w_ref[...], preferred_element_type=jnp.float32
    ).astype(o_ref.dtype)


# ---------------------------------------------------------------------------
# Kernel 2: adjacency reduction with an f32 VMEM accumulator.
#   fused=True : acc_b += adj_tile @ x_tile_b      ; out = acc @ W + bias
#   fused=False: acc_b += adj_tile @ support_tile_b; out = acc + bias
# ---------------------------------------------------------------------------
def adj_reduce_kernel(*refs, bb, fused):
    if fused:
        rhs_ref, adj_ref, w_ref, b_ref, o_ref, acc_ref = refs
    else:
        rhs_ref, adj_ref, b_ref, o_ref, acc_ref = refs
        w_ref = None

    k = pl.program_id(2)
    adj_tile = adj_ref[...]

    def accumulate(first):
        for b in range(bb):
            prod = jnp.dot(
                adj_tile, rhs_ref[b], preferred_element_type=jnp.float32
            )
            if first:
                acc_ref[b] = prod          # direct assign: no zero-init + RMW
            else:
                acc_ref[b] += prod

    @pl.when(k == 0)
    def _init():
        accumulate(True)

    @pl.when(k > 0)
    def _accum():
        accumulate(False)

    @pl.when(k == pl.num_programs(2) - 1)
    def _finalize():
        bias = b_ref[...]
        for b in range(bb):
            acc = acc_ref[b]
            if fused:
                acc = jnp.dot(
                    acc, w_ref[...], preferred_element_type=jnp.float32
                )
            o_ref[b] = (acc + bias).astype(o_ref.dtype)


# ---------------------------------------------------------------------------
# Wrapper
# ---------------------------------------------------------------------------
def graph_convolution(
    x, adj, weight, bias=None, *, compute_dtype=jnp.float32, tile_n=None,
    batch_block=None,
):
    """GCN forward: adj @ (x @ W) + bias.

    x:      (B, N, Fin) float32
    adj:    (N, N)      float32 (shared across batch, as in the module)
    weight: (Fin, Fout) float32
    bias:   (Fout,)     float32 or None
    compute_dtype: dtype for the adj / x MXU operands (accumulation stays f32).
    returns (B, N, Fout) float32
    """
    x = jnp.asarray(x, jnp.float32)
    adj = jnp.asarray(adj, jnp.float32)
    weight = jnp.asarray(weight, jnp.float32)

    B, N, Fin = x.shape
    Fin_w, Fout = weight.shape
    assert Fin_w == Fin, "weight / x feature mismatch"

    if bias is None:
        bias = jnp.zeros((Fout,), jnp.float32)
    else:
        bias = jnp.asarray(bias, jnp.float32)

    # Pick the ordering that minimizes the dominant N*N contraction width.
    # (adj @ x) @ W differs from adj @ (x @ W) only by fp reassociation.
    fused = Fin <= Fout

    comp = jnp.dtype(compute_dtype)
    f_out_p = _round_up(Fout, 128)

    # --- tiling -----------------------------------------------------------
    if tile_n is None:
        # Small N: one full-extent block (no column tiling, no pad copies).
        # Large N: 512 tiles (measured ~85% of HBM roofline on v6e).
        tile_n = _round_up(N, 8) if N <= 512 else 512
    n_p = _round_up(N, tile_n)
    assert tile_n == n_p or tile_n % 128 == 0, "tiled tk must be a multiple of 128"
    tm = tk = tile_n
    row_tiles = n_p // tm

    # --- batch blocking (adj tile reuse), keep >=2 parallel grid points ----
    if batch_block is None:
        bb = 4 if B % 4 == 0 else (2 if B % 2 == 0 else 1)
        while bb > 1 and (B // bb) * row_tiles < 2:
            bb //= 2
    else:
        bb = batch_block
    assert B % bb == 0, "batch_block must divide the batch"

    # --- operand preparation (pad only when required) ----------------------
    if n_p != N:
        adj_c = jnp.zeros((n_p, n_p), comp).at[:N, :N].set(adj.astype(comp))
    else:
        adj_c = adj.astype(comp)

    if f_out_p != Fout:
        wp = jnp.zeros((Fin, f_out_p), jnp.float32).at[:, :Fout].set(weight)
        bp = jnp.zeros((1, f_out_p), jnp.float32).at[0, :Fout].set(bias)
    else:
        wp = weight
        bp = bias.reshape(1, Fout)

    if fused:
        rhs = x.astype(comp)
        if n_p != N:
            rhs = jnp.zeros((B, n_p, Fin), comp).at[:, :N, :].set(rhs)
        rhs_cols = Fin
    else:
        # Precompute support = x @ W exactly once (no per-row-tile redundancy).
        x32 = x
        if n_p != N:
            x32 = jnp.zeros((B, n_p, Fin), jnp.float32).at[:, :N, :].set(x32)
        rhs = pl.pallas_call(
            support_kernel,
            out_shape=jax.ShapeDtypeStruct((B, n_p, f_out_p), comp),
            grid_spec=pltpu.PrefetchScalarGridSpec(
                num_scalar_prefetch=0,
                grid=(B, n_p // tm),
                in_specs=[
                    pl.BlockSpec((1, tm, Fin), lambda b, i: (b, i, 0)),
                    pl.BlockSpec((Fin, f_out_p), lambda b, i: (0, 0)),
                ],
                out_specs=pl.BlockSpec((1, tm, f_out_p), lambda b, i: (b, i, 0)),
            ),
            compiler_params=pltpu.CompilerParams(
                dimension_semantics=("parallel", "parallel"),
            ),
        )(x32, wp)
        rhs_cols = f_out_p

    # --- VMEM budget (explicit limit; default scoped limit is 16-32 MiB) ---
    cb = comp.itemsize
    vmem_est = (
        2 * bb * tk * max(rhs_cols, 128) * cb      # rhs, double-buffered
        + 2 * tm * max(tk, 128) * cb               # adj, double-buffered
        + 2 * bb * tm * f_out_p * 4                # out, double-buffered
        + bb * tm * max(rhs_cols, 128) * 4         # f32 accumulator scratch
        + 2 * max(Fin, 8) * f_out_p * 4            # W (fused path)
        + 2 * 8 * f_out_p * 4                      # bias
    )
    vmem_limit = int(min(max(1.4 * vmem_est, 32 * 2**20), 100 * 2**20))

    # Grid-invariant W: drop the second pipeline buffer only when it is large
    # enough to matter (v7x has 64 MiB physical VMEM).
    if fused:
        if Fin * f_out_p * 4 >= (4 << 20):
            w_spec = pl.BlockSpec((Fin, f_out_p), lambda bg, i, k: (0, 0),
                                  pipeline_mode=pl.Buffered(1))
        else:
            w_spec = pl.BlockSpec((Fin, f_out_p), lambda bg, i, k: (0, 0))

    in_specs = [
        # rhs rows follow the contraction tile k; batch block bg.
        pl.BlockSpec((bb, tk, rhs_cols), lambda bg, i, k: (bg, k, 0)),
        # adjacency tile (row tile i, col tile k) — reused by bb batch elems.
        pl.BlockSpec((tm, tk), lambda bg, i, k: (i, k)),
    ]
    inputs = [rhs, adj_c]
    if fused:
        in_specs.append(w_spec)
        inputs.append(wp)
    in_specs.append(pl.BlockSpec((1, f_out_p), lambda bg, i, k: (0, 0)))
    inputs.append(bp)

    kernel = functools.partial(adj_reduce_kernel, bb=bb, fused=fused)

    out_p = pl.pallas_call(
        kernel,
        out_shape=jax.ShapeDtypeStruct((B, n_p, f_out_p), jnp.float32),
        grid_spec=pltpu.PrefetchScalarGridSpec(
            num_scalar_prefetch=0,
            grid=(B // bb, row_tiles, n_p // tk),
            in_specs=in_specs,
            # Output block is resident across the reduction axis k; written
            # only on the last k step.
            out_specs=pl.BlockSpec((bb, tm, f_out_p), lambda bg, i, k: (bg, i, 0)),
            scratch_shapes=[pltpu.VMEM((bb, tm, rhs_cols), jnp.float32)],
        ),
        compiler_params=pltpu.CompilerParams(
            dimension_semantics=("parallel", "parallel", "arbitrary"),
            vmem_limit_bytes=vmem_limit,
        ),
    )(*inputs)

    return out_p[:, :N, :Fout]


# ---------------------------------------------------------------------------
# Reference + self-test
# ---------------------------------------------------------------------------
def _reference(x, adj, weight, bias):
    support = jnp.matmul(x, weight, precision="highest")
    out = jnp.einsum("ij,bjk->bik", adj, support, precision="highest")
    if bias is not None:
        out = out + bias
    return out


if __name__ == "__main__":
    key = jax.random.PRNGKey(0)
    kx, ka, kw, kb, kx2, kw2, kx3, ka3 = jax.random.split(key, 8)

    # --- Case 1: Fin <= Fout -> fused (adj@x)@W path, f32 -------------------
    B, N, Fin, Fout = 2, 16, 8, 32
    stdv = 1.0 / math.sqrt(Fout)
    weight = jax.random.uniform(kw, (Fin, Fout), jnp.float32, -stdv, stdv)
    bias = jax.random.uniform(kb, (Fout,), jnp.float32, -stdv, stdv)
    x = jax.random.normal(kx, (B, N, Fin), jnp.float32)
    adj = jax.random.uniform(ka, (N, N), jnp.float32)

    out = jax.block_until_ready(graph_convolution(x, adj, weight, bias))
    ref = _reference(x, adj, weight, bias)
    assert out.shape == (B, N, Fout)
    assert jnp.allclose(out, ref, atol=1e-4, rtol=1e-4), "case 1 mismatch"

    # --- Case 2: Fin > Fout -> x@W precomputed once, bias=None --------------
    Fin2, Fout2 = 32, 8
    stdv2 = 1.0 / math.sqrt(Fout2)
    weight2 = jax.random.uniform(kw2, (Fin2, Fout2), jnp.float32, -stdv2, stdv2)
    x2 = jax.random.normal(kx2, (B, N, Fin2), jnp.float32)

    out2 = jax.block_until_ready(graph_convolution(x2, adj, weight2, None))
    ref2 = _reference(x2, adj, weight2, None)
    assert out2.shape == (B, N, Fout2)
    assert jnp.allclose(out2, ref2, atol=1e-4, rtol=1e-4), "case 2 mismatch"

    # --- Case 3: multi-step reduction grid + batch blocking ------------------
    N3 = 256
    x3 = jax.random.normal(kx3, (B, N3, Fin), jnp.float32)
    adj3 = jax.random.uniform(ka3, (N3, N3), jnp.float32)
    out3 = jax.block_until_ready(
        graph_convolution(x3, adj3, weight, bias, tile_n=128))
    ref3 = _reference(x3, adj3, weight, bias)
    assert out3.shape == (B, N3, Fout)
    assert jnp.allclose(out3, ref3, atol=1e-3, rtol=1e-3), "case 3 mismatch"

    # --- Case 4: bf16 MXU inputs, f32 accumulation (looser tolerance) -------
    out4 = jax.block_until_ready(
        graph_convolution(x, adj, weight, bias, compute_dtype=jnp.bfloat16))
    assert jnp.allclose(out4, ref, atol=5e-2, rtol=5e-2), "case 4 mismatch"

    print("KERNEL_OK")
</pallas_src>

<mosaic_0001>
module attributes {stable_mosaic.version = 11 : i64} {
  func.func @adj_reduce_kernel(%arg0: i32, %arg1: i32, %arg2: i32, %arg3: memref<1x16x8xf32, #tpu.memory_space<vmem>>, %arg4: memref<16x16xf32, #tpu.memory_space<vmem>>, %arg5: memref<8x128xf32, #tpu.memory_space<vmem>>, %arg6: memref<1x128xf32, #tpu.memory_space<vmem>>, %arg7: memref<1x16x128xf32, #tpu.memory_space<vmem>>, %arg8: memref<1x16x8xf32, #tpu.memory_space<vmem>>) attributes {dimension_semantics = [#tpu.dimension_semantics<parallel>, #tpu.dimension_semantics<parallel>, #tpu.dimension_semantics<arbitrary>], iteration_bounds = array<i64: 2, 1, 1>, scalar_prefetch = 0 : i64, scratch_operands = 1 : i64, tpu.core_type = #tpu.core_type<tc>, window_params = [{transform_indices = @transform_0, window_bounds = array<i64: 1, 16, 8>}, {transform_indices = @transform_1, window_bounds = array<i64: 16, 16>}, {pipeline_mode = #tpu.pipeline_mode<synchronous>, transform_indices = @transform_2, window_bounds = array<i64: 8, 128>}, {pipeline_mode = #tpu.pipeline_mode<synchronous>, transform_indices = @transform_3, window_bounds = array<i64: 1, 128>}, {transform_indices = @transform_4, window_bounds = array<i64: 1, 16, 128>}]} {
    %c0 = arith.constant 0 : index
    %c0_0 = arith.constant 0 : index
    %0 = vector.load %arg4[%c0, %c0_0] : memref<16x16xf32, #tpu.memory_space<vmem>>, vector<16x16xf32>
    %c0_i32 = arith.constant 0 : i32
    %1 = arith.cmpi eq, %arg2, %c0_i32 : i32
    %2 = arith.extui %1 : i1 to i32
    %c0_i32_1 = arith.constant 0 : i32
    %3 = arith.cmpi ne, %2, %c0_i32_1 : i32
    scf.if %3 {
      %c0_6 = arith.constant 0 : index
      %c0_7 = arith.constant 0 : index
      %c0_8 = arith.constant 0 : index
      %10 = vector.load %arg3[%c0_6, %c0_7, %c0_8] : memref<1x16x8xf32, #tpu.memory_space<vmem>>, vector<1x16x8xf32>
      %11 = vector.shape_cast %10 : vector<1x16x8xf32> to vector<16x8xf32>
      %cst = arith.constant dense<0.000000e+00> : vector<16x8xf32>
      %12 = tpu.matmul %0, %11, %cst {dimension_numbers = #tpu.dot_dimension_numbers<[1], [0], [0], [1], [0, 0, 1, 1], [], []>} : vector<16x16xf32>, vector<16x8xf32>, vector<16x8xf32> -> vector<16x8xf32>
      %c0_9 = arith.constant 0 : index
      %c0_10 = arith.constant 0 : index
      %c0_11 = arith.constant 0 : index
      %13 = vector.load %arg8[%c0_9, %c0_10, %c0_11] : memref<1x16x8xf32, #tpu.memory_space<vmem>>, vector<1x16x8xf32>
      %14 = vector.shape_cast %13 : vector<1x16x8xf32> to vector<16x8xf32>
      %15 = vector.shape_cast %12 : vector<16x8xf32> to vector<1x16x8xf32>
      tpu.vector_store %arg8[%c0_9, %c0_10, %c0_11], %15 {strides = array<i32>} : memref<1x16x8xf32, #tpu.memory_space<vmem>>, vector<1x16x8xf32>,
    } else {
    }
    %c0_i32_2 = arith.constant 0 : i32
    %4 = arith.cmpi sgt, %arg2, %c0_i32_2 : i32
    %5 = arith.extui %4 : i1 to i32
    %c0_i32_3 = arith.constant 0 : i32
    %6 = arith.cmpi ne, %5, %c0_i32_3 : i32
    scf.if %6 {
      %c0_6 = arith.constant 0 : index
      %c0_7 = arith.constant 0 : index
      %c0_8 = arith.constant 0 : index
      %10 = vector.load %arg3[%c0_6, %c0_7, %c0_8] : memref<1x16x8xf32, #tpu.memory_space<vmem>>, vector<1x16x8xf32>
      %11 = vector.shape_cast %10 : vector<1x16x8xf32> to vector<16x8xf32>
      %cst = arith.constant dense<0.000000e+00> : vector<16x8xf32>
      %12 = tpu.matmul %0, %11, %cst {dimension_numbers = #tpu.dot_dimension_numbers<[1], [0], [0], [1], [0, 0, 1, 1], [], []>} : vector<16x16xf32>, vector<16x8xf32>, vector<16x8xf32> -> vector<16x8xf32>
      %c0_9 = arith.constant 0 : index
      %c0_10 = arith.constant 0 : index
      %c0_11 = arith.constant 0 : index
      %13 = vector.load %arg8[%c0_9, %c0_10, %c0_11] : memref<1x16x8xf32, #tpu.memory_space<vmem>>, vector<1x16x8xf32>
      %14 = vector.shape_cast %13 : vector<1x16x8xf32> to vector<16x8xf32>
      %15 = arith.addf %14, %12 : vector<16x8xf32>
      %c0_12 = arith.constant 0 : index
      %c0_13 = arith.constant 0 : index
      %c0_14 = arith.constant 0 : index
      %16 = vector.load %arg8[%c0_12, %c0_13, %c0_14] : memref<1x16x8xf32, #tpu.memory_space<vmem>>, vector<1x16x8xf32>
      %17 = vector.shape_cast %16 : vector<1x16x8xf32> to vector<16x8xf32>
      %18 = vector.shape_cast %15 : vector<16x8xf32> to vector<1x16x8xf32>
      tpu.vector_store %arg8[%c0_12, %c0_13, %c0_14], %18 {strides = array<i32>} : memref<1x16x8xf32, #tpu.memory_space<vmem>>, vector<1x16x8xf32>,
    } else {
    }
    %c0_i32_4 = arith.constant 0 : i32
    %7 = arith.cmpi eq, %arg2, %c0_i32_4 : i32
    %8 = arith.extui %7 : i1 to i32
    %c0_i32_5 = arith.constant 0 : i32
    %9 = arith.cmpi ne, %8, %c0_i32_5 : i32
    scf.if %9 {
      %c0_6 = arith.constant 0 : index
      %c0_7 = arith.constant 0 : index
      %10 = vector.load %arg6[%c0_6, %c0_7] : memref<1x128xf32, #tpu.memory_space<vmem>>, vector<1x128xf32>
      %c0_8 = arith.constant 0 : index
      %c0_9 = arith.constant 0 : index
      %c0_10 = arith.constant 0 : index
      %11 = vector.load %arg8[%c0_8, %c0_9, %c0_10] : memref<1x16x8xf32, #tpu.memory_space<vmem>>, vector<1x16x8xf32>
      %12 = vector.shape_cast %11 : vector<1x16x8xf32> to vector<16x8xf32>
      %c0_11 = arith.constant 0 : index
      %c0_12 = arith.constant 0 : index
      %13 = vector.load %arg5[%c0_11, %c0_12] : memref<8x128xf32, #tpu.memory_space<vmem>>, vector<8x128xf32>
      %cst = arith.constant dense<0.000000e+00> : vector<16x128xf32>
      %14 = tpu.matmul %12, %13, %cst {dimension_numbers = #tpu.dot_dimension_numbers<[1], [0], [0], [1], [0, 0, 1, 1], [], []>} : vector<16x8xf32>, vector<8x128xf32>, vector<16x128xf32> -> vector<16x128xf32>
      %15 = vector.broadcast %10 : vector<1x128xf32> to vector<16x128xf32>
      %16 = arith.addf %14, %15 : vector<16x128xf32>
      %c0_13 = arith.constant 0 : index
      %c0_14 = arith.constant 0 : index
      %c0_15 = arith.constant 0 : index
      %17 = vector.load %arg7[%c0_13, %c0_14, %c0_15] : memref<1x16x128xf32, #tpu.memory_space<vmem>>, vector<1x16x128xf32>
      %18 = vector.shape_cast %17 : vector<1x16x128xf32> to vector<16x128xf32>
      %19 = vector.shape_cast %16 : vector<16x128xf32> to vector<1x16x128xf32>
      tpu.vector_store %arg7[%c0_13, %c0_14, %c0_15], %19 {strides = array<i32>} : memref<1x16x128xf32, #tpu.memory_space<vmem>>, vector<1x16x128xf32>,
    } else {
    }
    return
  }
  func.func @transform_0(%arg0: i32, %arg1: i32, %arg2: i32) -> (i32, i32, i32) {
    %c0_i32 = arith.constant 0 : i32
    %c0_i32_0 = arith.constant 0 : i32
    return %arg0, %arg2, %c0_i32 : i32, i32, i32
  }
  func.func @transform_1(%arg0: i32, %arg1: i32, %arg2: i32) -> (i32, i32) {
    %c0_i32 = arith.constant 0 : i32
    return %arg1, %arg2 : i32, i32
  }
  func.func @transform_2(%arg0: i32, %arg1: i32, %arg2: i32) -> (i32, i32) {
    %c0_i32 = arith.constant 0 : i32
    %c0_i32_0 = arith.constant 0 : i32
    %c0_i32_1 = arith.constant 0 : i32
    return %c0_i32, %c0_i32_0 : i32, i32
  }
  func.func @transform_3(%arg0: i32, %arg1: i32, %arg2: i32) -> (i32, i32) {
    %c0_i32 = arith.constant 0 : i32
    %c0_i32_0 = arith.constant 0 : i32
    %c0_i32_1 = arith.constant 0 : i32
    return %c0_i32, %c0_i32_0 : i32, i32
  }
  func.func @transform_4(%arg0: i32, %arg1: i32, %arg2: i32) -> (i32, i32, i32) {
    %c0_i32 = arith.constant 0 : i32
    %c0_i32_0 = arith.constant 0 : i32
    return %arg0, %arg1, %c0_i32 : i32, i32, i32
  }
}

</mosaic_0001>

<llo_original>
// kernel: tpu_custom_call.1
$region0: #{tpu_custom_call.1}
  #allocation0 [shape = 'u32[]', space=smem, size = 0x4, offset = 0x4, fixed_abs, tag = 'smem constant byte address 0x4 - core index']
  #allocation1 [shape = 'u32[144,128]{1,0:T(1,128)}', space=vmem, size = 0x12000, scoped, tag = 'internal scratch']
  #allocation2 [shape = 'f32[1,16,8]{2,1,0:T(8,128)}', space=vmem, size = 0x2000, scoped, tag = 'scratch operand']
  %s0 = inlined_call_operand.vmem [shape: f32[2,16,8], index: 0, kind: input, shape index: {}]
  %s1 = inlined_call_operand.vmem [shape: f32[16,16], index: 1, kind: input, shape index: {}]
  %s2 = inlined_call_operand.vmem [shape: f32[8,128], index: 2, kind: input, shape index: {}]
  %s3 = inlined_call_operand.vmem [shape: f32[1,128], index: 3, kind: input, shape index: {}]
  %s4 = inlined_call_operand.hbm [shape: f32[2,16,128], index: 4, kind: output, shape index: {}]
  %s5 = sld [smem:[#allocation0]]
  $region61: #{tpu_custom_call.1} parent=0
    _
  %s7 = ssub.s32 1, %s5
  %s8 = scalar_select 0, %s7, %s5
  $region1: #{tpu_custom_call.1} parent=0
    #allocation3 [shape = 'u8[16384]{0}', space=vmem, size = 0x4000, scoped, tag = 'output window, operand 0']
    #allocation4 [shape = 's32[2]{0}', space=sflag, size = 0x8, scoped, tag = 'scoped memory for tpu_custom_call.1']
    %9 = vsyncpa [#allocation4], 0
    %s10 = scalar_lea.sflag [#allocation4], 1
    %11 = vsyncpa %s10, 0
    loop: start=0, step=1, limit=4
    $region2: #{tpu_custom_call.1} parent=1 // loop_pre_header
      _
    $region3: #{tpu_custom_call.1} parent=1 // loop_header
      %s13 = sphi 0, %s17
      %p14 = scmp.ge.s32.totalorder %s13, 4
      %s20 = sphi 0, %s39
      %s21 = sphi 0, %s35
      %s22 = sphi 0, %s31
      %s23 = sphi 0, %s20
      %s24 = sphi 0, %s21
      %s25 = sphi 0, %s22
      %s26 = sphi 0, %s23
      %s27 = sphi 0, %s24
      %s28 = sphi 0, %s25
      %s44 = sphi 0, %s46
      %s47 = sphi 0, %s44
      %s48 = sphi 0, %s47
      %s64 = sphi 0, %s48
      %s72 = sphi 0, %s74
      %s75 = sphi 0, %s72
      %s76 = sphi 0, %s75
      %s92 = sphi 0, %s76
      %s96 = sphi 0, %s96
      %s98 = sphi 0, %s96
      %s99 = sphi 0, %s98
      %s113 = sphi 0, %s99
      %s117 = sphi 0, %s117
      %s119 = sphi 0, %s117
      %s120 = sphi 0, %s119
      %s134 = sphi 0, %s120
      %s142 = sphi 0, %s144
      %s145 = sphi 0, %s142
      %s146 = sphi 0, %s145
      %s162 = sphi 0, %s146
    $region4: #{tpu_custom_call.1} parent=1 // loop_header_branch
      %16 = sbr.rel (%p14) target = $region8
    $region5: #{tpu_custom_call.1} parent=1 // loop_body
      %s18 = ssub.s32 %s13, 1
      %s19 = ssub.s32 %s13, 2
      %s29 = sadd.s32 1, %s22
      %p30 = scmp.ge.s32.totalorder %s29, 1
      %s31 = scalar_select %p30, 0, %s29
      %s32 = sadd.s32 1, %s21
      %s33 = scalar_select %p30, %s32, %s21
      %p34 = scmp.ge.s32.totalorder %s33, 1
      %s35 = scalar_select %p34, 0, %s33
      %s36 = sadd.s32 1, %s20
      %s37 = scalar_select %p34, %s36, %s20
      %p38 = scmp.ge.s32.totalorder %s37, 2
      %s39 = scalar_select %p38, 0, %s37
      %s40 = ssub.s32 %s20, %s39
      %s41 = ssub.s32 %s22, %s31
      %s42 = sor.u32 %s40, %s41
      %p43 = scmp.eq.s32.totalorder %s42, 0
      %s45 = sadd.s32 %s44, 1
      %s46 = scalar_select %p43, %s44, %s45
      %p49 = pneg %p43
      %p50 = scmp.eq.s32.totalorder %s13, 1
      %p51 = por %p49, %p50
      %p52 = scmp.ne.s32.totalorder %s44, %s47
      %p53 = scmp.eq.s32.totalorder %s13, 0
      %p54 = por %p52, %p53
      %p55 = scmp.ne.s32.totalorder %s44, %s47
      %p56 = scmp.eq.s32.totalorder %s18, 1
      %p57 = por %p55, %p56
      %p58 = scmp.ne.s32.totalorder %s47, %s48
      %p59 = scmp.eq.s32.totalorder %s18, 0
      %p60 = por %p58, %p59
      %p61 = scmp.ne.s32.totalorder %s47, %s48
      %p62 = scmp.eq.s32.totalorder %s19, 1
      %p63 = por %p61, %p62
      %p65 = scmp.ne.s32.totalorder %s48, %s64
      %p66 = scmp.eq.s32.totalorder %s19, 0
      %p67 = por %p65, %p66
      %s68 = ssub.s32 %s21, %s35
      %s69 = ssub.s32 %s22, %s31
      %s70 = sor.u32 %s68, %s69
      %p71 = scmp.eq.s32.totalorder %s70, 0
      %s73 = sadd.s32 %s72, 1
      %s74 = scalar_select %p71, %s72, %s73
      %p77 = pneg %p71
      %p78 = scmp.eq.s32.totalorder %s13, 1
      %p79 = por %p77, %p78
      %p80 = scmp.ne.s32.totalorder %s72, %s75
      %p81 = scmp.eq.s32.totalorder %s13, 0
      %p82 = por %p80, %p81
      %p83 = scmp.ne.s32.totalorder %s72, %s75
      %p84 = scmp.eq.s32.totalorder %s18, 1
      %p85 = por %p83, %p84
      %p86 = scmp.ne.s32.totalorder %s75, %s76
      %p87 = scmp.eq.s32.totalorder %s18, 0
      %p88 = por %p86, %p87
      %p89 = scmp.ne.s32.totalorder %s75, %s76
      %p90 = scmp.eq.s32.totalorder %s19, 1
      %p91 = por %p89, %p90
      %p93 = scmp.ne.s32.totalorder %s76, %s92
      %p94 = scmp.eq.s32.totalorder %s19, 0
      %p95 = por %p93, %p94
      %s97 = sadd.s32 %s96, 1
      %p100 = scmp.eq.s32.totalorder %s13, 1
      %p101 = scmp.ne.s32.totalorder %s96, %s98
      %p102 = scmp.eq.s32.totalorder %s13, 0
      %p103 = por %p101, %p102
      %p104 = scmp.ne.s32.totalorder %s96, %s98
      %p105 = scmp.eq.s32.totalorder %s18, 1
      %p106 = por %p104, %p105
      %p107 = scmp.ne.s32.totalorder %s98, %s99
      %p108 = scmp.eq.s32.totalorder %s18, 0
      %p109 = por %p107, %p108
      %p110 = scmp.ne.s32.totalorder %s98, %s99
      %p111 = scmp.eq.s32.totalorder %s19, 1
      %p112 = por %p110, %p111
      %p114 = scmp.ne.s32.totalorder %s99, %s113
      %p115 = scmp.eq.s32.totalorder %s19, 0
      %p116 = por %p114, %p115
      %s118 = sadd.s32 %s117, 1
      %p121 = scmp.eq.s32.totalorder %s13, 1
      %p122 = scmp.ne.s32.totalorder %s117, %s119
      %p123 = scmp.eq.s32.totalorder %s13, 0
      %p124 = por %p122, %p123
      %p125 = scmp.ne.s32.totalorder %s117, %s119
      %p126 = scmp.eq.s32.totalorder %s18, 1
      %p127 = por %p125, %p126
      %p128 = scmp.ne.s32.totalorder %s119, %s120
      %p129 = scmp.eq.s32.totalorder %s18, 0
      %p130 = por %p128, %p129
      %p131 = scmp.ne.s32.totalorder %s119, %s120
      %p132 = scmp.eq.s32.totalorder %s19, 1
      %p133 = por %p131, %p132
      %p135 = scmp.ne.s32.totalorder %s120, %s134
      %p136 = scmp.eq.s32.totalorder %s19, 0
      %p137 = por %p135, %p136
      %s138 = ssub.s32 %s20, %s39
      %s139 = ssub.s32 %s21, %s35
      %s140 = sor.u32 %s138, %s139
      %p141 = scmp.eq.s32.totalorder %s140, 0
      %s143 = sadd.s32 %s142, 1
      %s144 = scalar_select %p141, %s142, %s143
      %p147 = pneg %p141
      %p148 = scmp.eq.s32.totalorder %s13, 1
      %p149 = por %p147, %p148
      %p150 = scmp.ne.s32.totalorder %s142, %s145
      %p151 = scmp.eq.s32.totalorder %s13, 0
      %p152 = por %p150, %p151
      %p153 = scmp.ne.s32.totalorder %s142, %s145
      %p154 = scmp.eq.s32.totalorder %s18, 1
      %p155 = por %p153, %p154
      %p156 = scmp.ne.s32.totalorder %s145, %s146
      %p157 = scmp.eq.s32.totalorder %s18, 0
      %p158 = por %p156, %p157
      %p159 = scmp.ne.s32.totalorder %s145, %s146
      %p160 = scmp.eq.s32.totalorder %s19, 1
      %p161 = por %p159, %p160
      %p163 = scmp.ne.s32.totalorder %s146, %s162
      %p164 = scmp.eq.s32.totalorder %s19, 0
      %p165 = por %p163, %p164
      %p166 = scmp.le.s32.totalorder 1, %s13
      %p167 = scmp.lt.s32.totalorder %s13, 3
      %p168 = pnand %p166, %p167
      %p169 = pneg %p168
      // Predicated region
      $region9: #{tpu_custom_call.1} parent=5 // pred_check
        _
      $region10: #{tpu_custom_call.1} parent=5 // pred_check_branch
        %171 = sbr.rel (%p168) target = $region12
      $region11: #{tpu_custom_call.1} parent=5 // pred_region
        %s172 = ssub.s32 %s13, 1
        // Predicated region
        $region13: #{tpu_custom_call.1} parent=11 // pred_check
          %p173 = pneg %p88
        $region14: #{tpu_custom_call.1} parent=11 // pred_check_branch
          %175 = sbr.rel (%p173) target = $region16
        $region15: #{tpu_custom_call.1} parent=11 // pred_region
          %s176 = smul.u32 2, %s24
          %p177 = scmp.lt.s32.totalorder %s176, 1
          %s178 = scalar_select %p177, %s176, 1
          %p179 = scmp.lt.s32.totalorder %s25, 0
          %s180 = scalar_select %p179, %s25, 0
          %s181 = sadd.s32 %s180, %s178
          %s182 = smul.addr %s181, 8
          %s183 = scalar_lea.vmem %s1, %s182
          %s184 = smul.u32 2, %s24
        $region16: #{tpu_custom_call.1} parent=11 // pred_fallthru
          _
        // Predicated region
        $region17: #{tpu_custom_call.1} parent=11 // pred_check
          %p185 = pneg %p109
        $region18: #{tpu_custom_call.1} parent=11 // pred_check_branch
          %187 = sbr.rel (%p185) target = $region20
        $region19: #{tpu_custom_call.1} parent=11 // pred_region
          _
        $region20: #{tpu_custom_call.1} parent=11 // pred_fallthru
          _
        // Predicated region
        $region21: #{tpu_custom_call.1} parent=11 // pred_check
          %p188 = pneg %p130
        $region22: #{tpu_custom_call.1} parent=11 // pred_check_branch
          %190 = sbr.rel (%p188) target = $region24
        $region23: #{tpu_custom_call.1} parent=11 // pred_region
          _
        $region24: #{tpu_custom_call.1} parent=11 // pred_fallthru
          _
      $region12: #{tpu_custom_call.1} parent=5 // pred_fallthru
        _
      %p191 = scmp.lt.s32.totalorder %s13, 2
      // Predicated region
      $region25: #{tpu_custom_call.1} parent=5 // pred_check
        %p192 = pneg %p191
      $region26: #{tpu_custom_call.1} parent=5 // pred_check_branch
        %194 = sbr.rel (%p192) target = $region28
      $region27: #{tpu_custom_call.1} parent=5 // pred_region
        // Predicated region
        $region29: #{tpu_custom_call.1} parent=27 // pred_check
          %p195 = pneg %p54
        $region30: #{tpu_custom_call.1} parent=27 // pred_check_branch
          %197 = sbr.rel (%p195) target = $region32
        $region31: #{tpu_custom_call.1} parent=27 // pred_region
          %s198 = smul.u32 2, %s22
          %p199 = scmp.lt.s32.totalorder %s20, 1
          %s200 = scalar_select %p199, %s20, 1
          %p201 = scmp.lt.s32.totalorder %s198, 1
          %s202 = scalar_select %p201, %s198, 1
          %s203 = smul.addr %s200, 2
          %s204 = sadd.s32 %s202, %s203
          %s205 = smul.addr %s204, 8
          %s206 = scalar_lea.vmem %s0, %s205
          %s207 = smul.u32 2, %s22
        $region32: #{tpu_custom_call.1} parent=27 // pred_fallthru
          _
      $region28: #{tpu_custom_call.1} parent=5 // pred_fallthru
        _
      %p208 = scmp.le.s32.totalorder 1, %s13
      %p209 = scmp.lt.s32.totalorder %s13, 3
      %p210 = pnand %p208, %p209
      %p211 = pneg %p210
      // Predicated region
      $region33: #{tpu_custom_call.1} parent=5 // pred_check
        _
      $region34: #{tpu_custom_call.1} parent=5 // pred_check_branch
        %213 = sbr.rel (%p210) target = $region36
      $region35: #{tpu_custom_call.1} parent=5 // pred_region
        %s214 = ssub.s32 %s13, 1
        %s215 = smul.u32 2, %s25
        %p216 = scmp.lt.s32.totalorder %s23, 1
        %s217 = scalar_select %p216, %s23, 1
        %p218 = scmp.lt.s32.totalorder %s215, 1
        %s219 = scalar_select %p218, %s215, 1
        %s220 = smul.addr %s217, 2
        %s221 = sadd.s32 %s219, %s220
        %s222 = smul.addr %s221, 8
        %s223 = scalar_lea.vmem %s0, %s222
        %p224 = pneg %p60
        %p225 = pneg %p57
        %s226 = smul.u32 2, %s24
        %p227 = scmp.lt.s32.totalorder %s226, 1
        %s228 = scalar_select %p227, %s226, 1
        %p229 = scmp.lt.s32.totalorder %s25, 0
        %s230 = scalar_select %p229, %s25, 0
        %s231 = sadd.s32 %s230, %s228
        %s232 = smul.addr %s231, 8
        %s233 = scalar_lea.vmem %s1, %s232
        %p234 = pneg %p88
        %p235 = pneg %p85
        %p236 = pneg %p109
        %p237 = pneg %p106
        %p238 = pneg %p130
        %p239 = pneg %p127
        %p240 = pneg %p158
        %p241 = pneg %p155
        %s242 = sand.u32 %s145, 1
        %s243 = scalar_lea.sflag [#allocation4], %s242
        %s244 = sand.u32 %s145, 1
        %s245 = smul.addr %s244, 16
        %s246 = scalar_lea.vmem [#allocation3], %s245
        %s247 = smul.u32 2, %s25
        %p248 = scmp.lt.s32.totalorder %s23, 1
        %s249 = scalar_select %p248, %s23, 1
        %p250 = scmp.lt.s32.totalorder %s247, 1
        %s251 = scalar_select %p250, %s247, 1
        %s252 = smul.addr %s249, 2
        %s253 = sadd.s32 %s251, %s252
        %s254 = smul.addr %s253, 8
        %s255 = scalar_lea.vmem %s0, %s254
        %s256 = smul.u32 2, %s25
        %s257 = smul.u32 2, %s24
        %p258 = scmp.lt.s32.totalorder %s257, 1
        %s259 = scalar_select %p258, %s257, 1
        %p260 = scmp.lt.s32.totalorder %s25, 0
        %s261 = scalar_select %p260, %s25, 0
        %s262 = sadd.s32 %s261, %s259
        %s263 = smul.addr %s262, 8
        %s264 = scalar_lea.vmem %s1, %s263
        %s265 = smul.u32 2, %s24
        %s266 = smul.u32 2, %s24
        %v267 = vld [vmem:[%s264] sm:$0xff]
        %v268 = vld [vmem:[%s264 + $0x8] sm:$0xff]
        %p269 = scmp.eq.s32.totalorder %s25, 0
        // Predicated region
        $region37: #{tpu_custom_call.1} parent=35 // pred_check
          %p270 = pneg %p269
        $region38: #{tpu_custom_call.1} parent=35 // pred_check_branch
          %272 = sbr.rel (%p270) target = $region40
        $region39: #{tpu_custom_call.1} parent=35 // pred_region
          %v273 = vld [vmem:[%s255] sm:$0xff]
          %v274 = vld [vmem:[%s255 + $0x8] sm:$0xff]
          %vm275 = vcmask 130048
          %v277 = vsel %vm275, %v267, 0
          %v280 = vsel %vm275, %v268, 0
          %282 = vmatprep.subr.mxu0 0.0
          %283 = vmatpush1.msra.mxu0 %v273
          %284 = vmatprep.subr.mxu0 0.0
          %285 = vmatpush1.msra.mxu0 %v274
          %286 = vmatprep.subr.mxu0 0.0
          %287 = vmatpush1.msra.mxu0 0.0
          %288 = vmatprep.subr.mxu0 0.0
          %289 = vmatpush1.msra.mxu0 0.0
          %290 = vmatprep.subr.mxu0 0.0
          %291 = vmatpush1.msra.mxu0 0.0
          %292 = vmatprep.subr.mxu0 0.0
          %293 = vmatpush1.msra.mxu0 0.0
          %294 = vmatprep.subr.mxu0 0.0
          %295 = vmatpush1.msra.mxu0 0.0
          %296 = vmatprep.subr.mxu0 0.0
          %297 = vmatpush1.msra.mxu0 0.0
          %298 = vmatprep.subr.mxu0 0.0
          %299 = vmatpush1.msra.mxu0 0.0
          %300 = vmatprep.subr.mxu0 0.0
          %301 = vmatpush1.msra.mxu0 0.0
          %302 = vmatprep.subr.mxu0 0.0
          %303 = vmatpush1.msra.mxu0 0.0
          %304 = vmatprep.subr.mxu0 0.0
          %305 = vmatpush1.msra.mxu0 0.0
          %306 = vmatprep.subr.mxu0 0.0
          %307 = vmatpush1.msra.mxu0 0.0
          %308 = vmatprep.subr.mxu0 0.0
          %309 = vmatpush1.msra.mxu0 0.0
          %310 = vmatprep.subr.mxu0 0.0
          %311 = vmatpush1.msra.mxu0 0.0
          %312 = vmatprep.subr.mxu0 0.0
          %313 = vmatpush1.msra.mxu0 0.0
          %314 = vmatprep.subr.mxu0 0.0
          %315 = vmatpush1.msra.mxu0 0.0
          %316 = vmatprep.subr.mxu0 0.0
          %317 = vmatpush1.msra.mxu0 0.0
          %318 = vmatprep.subr.mxu0 0.0
          %319 = vmatpush1.msra.mxu0 0.0
          %320 = vmatprep.subr.mxu0 0.0
          %321 = vmatpush1.msra.mxu0 0.0
          %322 = vmatprep.subr.mxu0 0.0
          %323 = vmatpush1.msra.mxu0 0.0
          %324 = vmatprep.subr.mxu0 0.0
          %325 = vmatpush1.msra.mxu0 0.0
          %326 = vmatprep.subr.mxu0 0.0
          %327 = vmatpush1.msra.mxu0 0.0
          %328 = vmatprep.subr.mxu0 0.0
          %329 = vmatpush1.msra.mxu0 0.0
          %330 = vmatprep.subr.mxu0 0.0
          %331 = vmatpush1.msra.mxu0 0.0
          %332 = vmatprep.subr.mxu0 0.0
          %333 = vmatpush1.msra.mxu0 0.0
          %334 = vmatprep.subr.mxu0 0.0
          %335 = vmatpush1.msra.mxu0 0.0
          %336 = vmatprep.subr.mxu0 0.0
          %337 = vmatpush1.msra.mxu0 0.0
          %338 = vmatprep.subr.mxu0 0.0
          %339 = vmatpush1.msra.mxu0 0.0
          %340 = vmatprep.subr.mxu0 0.0
          %341 = vmatpush1.msra.mxu0 0.0
          %342 = vmatprep.subr.mxu0 0.0
          %343 = vmatpush1.msra.mxu0 0.0
          %344 = vmatprep.subr.mxu0 0.0
          %345 = vmatpush1.msra.mxu0 0.0
          %346 = vmatprep.mubr.f32.mxu0 0.0
          %347 = vmatmul.mubr.f32.gmra.mrb[0].mxu0 %v277
          %v348 = vpop.f32.mrb[0].mxu0
          %v349 = vadd.f32 0.0, %v348
          %v350 = vpop.f32.mrb[0].mxu0
          %351 = vmatprep.mubr.f32.mxu0 0.0
          %352 = vmatmul.mubr.f32.gmra.mrb[0].mxu0 %v280
          %v353 = vpop.f32.mrb[0].mxu0
          %v354 = vadd.f32 0.0, %v353
          %v355 = vpop.f32.mrb[0].mxu0
          %356 = vdwg.mxu0
          %vm357 = vcmask 64512
          %358 = vst.msk [vmem:[#allocation2] sm:$0xff] %vm357, %v349
          %359 = vst.msk [vmem:[#allocation2 + $0x8] sm:$0xff] %vm357, %v354
        $region40: #{tpu_custom_call.1} parent=35 // pred_fallthru
          _
        %p360 = scmp.gt.s32.totalorder %s25, 0
        // Predicated region
        $region41: #{tpu_custom_call.1} parent=35 // pred_check
          %p361 = pneg %p360
        $region42: #{tpu_custom_call.1} parent=35 // pred_check_branch
          %363 = sbr.rel (%p361) target = $region44
        $region43: #{tpu_custom_call.1} parent=35 // pred_region
          %v364 = vld [vmem:[%s255] sm:$0xff]
          %v365 = vld [vmem:[%s255 + $0x8] sm:$0xff]
          %vm366 = vcmask 130048
          %v368 = vsel %vm366, %v267, 0
          %v371 = vsel %vm366, %v268, 0
          %373 = vmatprep.subr.mxu0 0.0
          %374 = vmatpush1.msra.mxu0 %v364
          %375 = vmatprep.subr.mxu0 0.0
          %376 = vmatpush1.msra.mxu0 %v365
          %377 = vmatprep.subr.mxu0 0.0
          %378 = vmatpush1.msra.mxu0 0.0
          %379 = vmatprep.subr.mxu0 0.0
          %380 = vmatpush1.msra.mxu0 0.0
          %381 = vmatprep.subr.mxu0 0.0
          %382 = vmatpush1.msra.mxu0 0.0
          %383 = vmatprep.subr.mxu0 0.0
          %384 = vmatpush1.msra.mxu0 0.0
          %385 = vmatprep.subr.mxu0 0.0
          %386 = vmatpush1.msra.mxu0 0.0
          %387 = vmatprep.subr.mxu0 0.0
          %388 = vmatpush1.msra.mxu0 0.0
          %389 = vmatprep.subr.mxu0 0.0
          %390 = vmatpush1.msra.mxu0 0.0
          %391 = vmatprep.subr.mxu0 0.0
          %392 = vmatpush1.msra.mxu0 0.0
          %393 = vmatprep.subr.mxu0 0.0
          %394 = vmatpush1.msra.mxu0 0.0
          %395 = vmatprep.subr.mxu0 0.0
          %396 = vmatpush1.msra.mxu0 0.0
          %397 = vmatprep.subr.mxu0 0.0
          %398 = vmatpush1.msra.mxu0 0.0
          %399 = vmatprep.subr.mxu0 0.0
          %400 = vmatpush1.msra.mxu0 0.0
          %401 = vmatprep.subr.mxu0 0.0
          %402 = vmatpush1.msra.mxu0 0.0
          %403 = vmatprep.subr.mxu0 0.0
          %404 = vmatpush1.msra.mxu0 0.0
          %405 = vmatprep.subr.mxu0 0.0
          %406 = vmatpush1.msra.mxu0 0.0
          %407 = vmatprep.subr.mxu0 0.0
          %408 = vmatpush1.msra.mxu0 0.0
          %409 = vmatprep.subr.mxu0 0.0
          %410 = vmatpush1.msra.mxu0 0.0
          %411 = vmatprep.subr.mxu0 0.0
          %412 = vmatpush1.msra.mxu0 0.0
          %413 = vmatprep.subr.mxu0 0.0
          %414 = vmatpush1.msra.mxu0 0.0
          %415 = vmatprep.subr.mxu0 0.0
          %416 = vmatpush1.msra.mxu0 0.0
          %417 = vmatprep.subr.mxu0 0.0
          %418 = vmatpush1.msra.mxu0 0.0
          %419 = vmatprep.subr.mxu0 0.0
          %420 = vmatpush1.msra.mxu0 0.0
          %421 = vmatprep.subr.mxu0 0.0
          %422 = vmatpush1.msra.mxu0 0.0
          %423 = vmatprep.subr.mxu0 0.0
          %424 = vmatpush1.msra.mxu0 0.0
          %425 = vmatprep.subr.mxu0 0.0
          %426 = vmatpush1.msra.mxu0 0.0
          %427 = vmatprep.subr.mxu0 0.0
          %428 = vmatpush1.msra.mxu0 0.0
          %429 = vmatprep.subr.mxu0 0.0
          %430 = vmatpush1.msra.mxu0 0.0
          %431 = vmatprep.subr.mxu0 0.0
          %432 = vmatpush1.msra.mxu0 0.0
          %433 = vmatprep.subr.mxu0 0.0
          %434 = vmatpush1.msra.mxu0 0.0
          %435 = vmatprep.subr.mxu0 0.0
          %436 = vmatpush1.msra.mxu0 0.0
          %437 = vmatprep.mubr.f32.mxu0 0.0
          %438 = vmatmul.mubr.f32.gmra.mrb[0].mxu0 %v368
          %v439 = vpop.f32.mrb[0].mxu0
          %v440 = vadd.f32 0.0, %v439
          %v441 = vpop.f32.mrb[0].mxu0
          %442 = vmatprep.mubr.f32.mxu0 0.0
          %443 = vmatmul.mubr.f32.gmra.mrb[0].mxu0 %v371
          %v444 = vpop.f32.mrb[0].mxu0
          %v445 = vadd.f32 0.0, %v444
          %v446 = vpop.f32.mrb[0].mxu0
          %447 = vdwg.mxu0
          %v448 = vld [vmem:[#allocation2] sm:$0xff]
          %v449 = vld [vmem:[#allocation2 + $0x8] sm:$0xff]
          %v450 = vadd.f32 %v448, %v440
          %v451 = vadd.f32 %v449, %v445
          %vm452 = vcmask 64512
          %453 = vst.msk [vmem:[#allocation2] sm:$0xff] %vm452, %v450
          %454 = vst.msk [vmem:[#allocation2 + $0x8] sm:$0xff] %vm452, %v451
        $region44: #{tpu_custom_call.1} parent=35 // pred_fallthru
          _
        // Predicated region
        $region45: #{tpu_custom_call.1} parent=35 // pred_check
          %p455 = pneg %p269
        $region46: #{tpu_custom_call.1} parent=35 // pred_check_branch
          %457 = sbr.rel (%p455) target = $region48
        $region47: #{tpu_custom_call.1} parent=35 // pred_region
          %v458 = vld [vmem:[%s3] sm:$0x1]
          %v459 = vld [vmem:[#allocation2] sm:$0xff]
          %v460 = vld [vmem:[#allocation2 + $0x8] sm:$0xff]
          %v461 = vld [vmem:[%s2] sm:$0xff]
          %v463 = vlaneseq
          %v464 = vshrl.u32 %v463, 7
          %v465 = vsub.s32 0, %v464
          %v466 = vrot.slane %v458, %v465
          %vm468 = vcmask 64512
          %v470 = vsel %vm468, %v459, 0
          %v473 = vsel %vm468, %v460, 0
          %475 = vmatprep.subr.mxu0 0.0
          %476 = vmatpush1.msra.mxu0 %v461
          %477 = vmatprep.subr.mxu0 0.0
          %478 = vmatpush1.msra.mxu0 0.0
          %479 = vmatprep.subr.mxu0 0.0
          %480 = vmatpush1.msra.mxu0 0.0
          %481 = vmatprep.subr.mxu0 0.0
          %482 = vmatpush1.msra.mxu0 0.0
          %483 = vmatprep.subr.mxu0 0.0
          %484 = vmatpush1.msra.mxu0 0.0
          %485 = vmatprep.subr.mxu0 0.0
          %486 = vmatpush1.msra.mxu0 0.0
          %487 = vmatprep.subr.mxu0 0.0
          %488 = vmatpush1.msra.mxu0 0.0
          %489 = vmatprep.subr.mxu0 0.0
          %490 = vmatpush1.msra.mxu0 0.0
          %491 = vmatprep.subr.mxu0 0.0
          %492 = vmatpush1.msra.mxu0 0.0
          %493 = vmatprep.subr.mxu0 0.0
          %494 = vmatpush1.msra.mxu0 0.0
          %495 = vmatprep.subr.mxu0 0.0
          %496 = vmatpush1.msra.mxu0 0.0
          %497 = vmatprep.subr.mxu0 0.0
          %498 = vmatpush1.msra.mxu0 0.0
          %499 = vmatprep.subr.mxu0 0.0
          %500 = vmatpush1.msra.mxu0 0.0
          %501 = vmatprep.subr.mxu0 0.0
          %502 = vmatpush1.msra.mxu0 0.0
          %503 = vmatprep.subr.mxu0 0.0
          %504 = vmatpush1.msra.mxu0 0.0
          %505 = vmatprep.subr.mxu0 0.0
          %506 = vmatpush1.msra.mxu0 0.0
          %507 = vmatprep.subr.mxu0 0.0
          %508 = vmatpush1.msra.mxu0 0.0
          %509 = vmatprep.subr.mxu0 0.0
          %510 = vmatpush1.msra.mxu0 0.0
          %511 = vmatprep.subr.mxu0 0.0
          %512 = vmatpush1.msra.mxu0 0.0
          %513 = vmatprep.subr.mxu0 0.0
          %514 = vmatpush1.msra.mxu0 0.0
          %515 = vmatprep.subr.mxu0 0.0
          %516 = vmatpush1.msra.mxu0 0.0
          %517 = vmatprep.subr.mxu0 0.0
          %518 = vmatpush1.msra.mxu0 0.0
          %519 = vmatprep.subr.mxu0 0.0
          %520 = vmatpush1.msra.mxu0 0.0
          %521 = vmatprep.subr.mxu0 0.0
          %522 = vmatpush1.msra.mxu0 0.0
          %523 = vmatprep.subr.mxu0 0.0
          %524 = vmatpush1.msra.mxu0 0.0
          %525 = vmatprep.subr.mxu0 0.0
          %526 = vmatpush1.msra.mxu0 0.0
          %527 = vmatprep.subr.mxu0 0.0
          %528 = vmatpush1.msra.mxu0 0.0
          %529 = vmatprep.subr.mxu0 0.0
          %530 = vmatpush1.msra.mxu0 0.0
          %531 = vmatprep.subr.mxu0 0.0
          %532 = vmatpush1.msra.mxu0 0.0
          %533 = vmatprep.subr.mxu0 0.0
          %534 = vmatpush1.msra.mxu0 0.0
          %535 = vmatprep.subr.mxu0 0.0
          %536 = vmatpush1.msra.mxu0 0.0
          %537 = vmatprep.subr.mxu0 0.0
          %538 = vmatpush1.msra.mxu0 0.0
          %539 = vmatprep.mubr.f32.mxu0 0.0
          %540 = vmatmul.mubr.f32.gmra.mrb[0].mxu0 %v470
          %v541 = vpop.f32.mrb[0].mxu0
          %v542 = vadd.f32 %v466, %v541
          %v543 = vpop.f32.mrb[0].mxu0
          %544 = vmatprep.mubr.f32.mxu0 0.0
          %545 = vmatmul.mubr.f32.gmra.mrb[0].mxu0 %v473
          %v546 = vpop.f32.mrb[0].mxu0
          %v547 = vadd.f32 %v466, %v546
          %v548 = vpop.f32.mrb[0].mxu0
          %549 = vdwg.mxu0
          %550 = vst [vmem:[%s246] sm:$0xff] %v542
          %551 = vst [vmem:[%s246 + $0x8] sm:$0xff] %v547
        $region48: #{tpu_custom_call.1} parent=35 // pred_fallthru
          _
        %s552 = sand.u32 %s145, 1
        %s553 = scalar_lea.sflag [#allocation4], %s552
        %s554 = sand.u32 %s145, 1
        %s555 = smul.addr %s554, 16
        %s556 = scalar_lea.vmem [#allocation3], %s555
        // Predicated region
        $region49: #{tpu_custom_call.1} parent=35 // pred_check
          %p557 = pneg %p155
        $region50: #{tpu_custom_call.1} parent=35 // pred_check_branch
          %559 = sbr.rel (%p557) target = $region52
        $region51: #{tpu_custom_call.1} parent=35 // pred_region
          %s560 = smul.u32 2, %s24
          %s562 = ssub.s32 256, 256
          %563 = vsyncadd %s553, %s562
          %s564 = smul.addr %s23, 2
          %s565 = sadd.s32 %s560, %s564
          %s566 = smul.addr %s565, 128
          %s567 = scalar_lea.hbm %s4, %s566
          %s568 = sshll.u32 %s556, 4
          %s569 = int_to_ptr.vmem [resolvable:$true] %s568
          %574 = dma.vmem_to_hbm [thread:$0]  %s569, 256, %s567, %s553, 128, 128, 8
        $region52: #{tpu_custom_call.1} parent=35 // pred_fallthru
          _
      $region36: #{tpu_custom_call.1} parent=5 // pred_fallthru
        _
      %p575 = scmp.le.s32.totalorder 2, %s13
      // Predicated region
      $region53: #{tpu_custom_call.1} parent=5 // pred_check
        %p576 = pneg %p575
      $region54: #{tpu_custom_call.1} parent=5 // pred_check_branch
        %578 = sbr.rel (%p576) target = $region56
      $region55: #{tpu_custom_call.1} parent=5 // pred_region
        %s579 = ssub.s32 %s13, 2
        // Predicated region
        $region57: #{tpu_custom_call.1} parent=55 // pred_check
          %p580 = pneg %p161
        $region58: #{tpu_custom_call.1} parent=55 // pred_check_branch
          %582 = sbr.rel (%p580) target = $region60
        $region59: #{tpu_custom_call.1} parent=55 // pred_region
          %s583 = sand.u32 %s146, 1
          %s584 = scalar_lea.sflag [#allocation4], %s583
          %s585 = sand.u32 %s146, 1
          %s586 = smul.addr %s585, 16
          %s587 = scalar_lea.vmem [#allocation3], %s586
          %588 = dma.done %s584, 256
        $region60: #{tpu_custom_call.1} parent=55 // pred_fallthru
          _
      $region56: #{tpu_custom_call.1} parent=5 // pred_fallthru
        _
    $region6: #{tpu_custom_call.1} parent=1 // loop_footer
      %s17 = sadd.s32 1, %s13
    $region7: #{tpu_custom_call.1} parent=1 // loop_footer_branch
      %12 = sbr.rel target = $region3
    $region8: #{tpu_custom_call.1} parent=1 // loop_exit
      _
    %589 = vsyncpa [#allocation4], 1
    %s590 = scalar_lea.sflag [#allocation4], 1
    %591 = vsyncpa %s590, 1

</llo_original>
